<compile_context>
chip_gen: v6e
topology: v6e:2x2x1
jax: 0.10.0
libtpu: 0.0.40
codegen_flags: <defaults>
</compile_context>

<pallas_src>
import jax
import jax.numpy as jnp
from jax import lax
from jax.experimental import pallas as pl
from jax.experimental.pallas import tpu as pltpu


def _round_up(x: int, m: int) -> int:
    return (x + m - 1) // m * m


def _itm_head_kernel(x_ref, w_ref, b_ref, o_ref):
    # x_ref: [TB, Hp]   (lane-dense packed hidden, streamed)
    # w_ref: [Np, Hp]   (resident; contracted on Hp -> no wrapper transpose)
    # b_ref: [1,  Np]   (resident)
    # o_ref: [TB, Np]
    acc = lax.dot_general(
        x_ref[...], w_ref[...],
        dimension_numbers=(((1,), (1,)), ((), ())),   # contract H on both
        preferred_element_type=jnp.float32,
    )
    o_ref[...] = (acc + b_ref[...]).astype(o_ref.dtype)


def mm_itm_head(x_pooled, weight, bias, *, tile_b: int = 4096):
    """x_pooled: [B, H]; weight: [2, H] (PyTorch layout); bias: [2] -> [B, 2]."""
    B, H = x_pooled.shape
    out_f = weight.shape[0]                      # == 2
    dtype = x_pooled.dtype

    # ---- lane packing over the hidden axis ---------------------------------
    pack, H_eff = 1, H
    if H < 128:
        cand = min(int(pl.next_power_of_2(max(H, 1))), 128)  # divisor of 128
        if 128 // cand > 1:
            H_eff, pack = cand, 128 // cand
    Hp = pack * H_eff                            # packed hidden (lane-dense)
    Np = pack * out_f                            # packed output width

    if H_eff != H:                               # one-time H zero-pad (rare)
        x_h = jnp.pad(x_pooled, ((0, 0), (0, H_eff - H)))
        w_h = jnp.pad(weight, ((0, 0), (0, H_eff - H)))
    else:
        x_h, w_h = x_pooled, weight

    # Block-diagonal packed weight [Np, Hp] and tiled bias [1, Np]; one-time
    # wrapper cost, resident in VMEM inside the kernel.
    if pack > 1:
        w_packed = jnp.kron(jnp.eye(pack, dtype=w_h.dtype), w_h)
        b_packed = jnp.tile(bias, pack).reshape(1, Np)
    else:
        w_packed = w_h
        b_packed = bias.reshape(1, Np)

    # ---- batch: pad ONLY to a multiple of `pack` (no round-up to TB) --------
    Bp = -(-B // pack)                           # packed rows
    B_pad = Bp * pack
    if B_pad != B:
        x_h = jnp.pad(x_h, ((0, B_pad - B), (0, 0)))
    x_packed = x_h.reshape(Bp, Hp)               # contiguous, free reshape

    # ---- tile selection -----------------------------------------------------
    tile_b = max(8, _round_up(int(tile_b), 8))   # defensive: (8,128) alignment
    TB = min(tile_b, _round_up(Bp, 8))
    grid = -(-Bp // TB)
    if grid > 1 and grid % 2 == 1:
        # Even step count -> balanced work across v7x's two TensorCores.
        grid += 1
        TB = max(8, _round_up(-(-Bp // grid), 8))
        grid = -(-Bp // TB)

    out_packed = pl.pallas_call(
        _itm_head_kernel,
        out_shape=jax.ShapeDtypeStruct((Bp, Np), dtype),
        grid_spec=pltpu.PrefetchScalarGridSpec(
            num_scalar_prefetch=0,
            grid=(grid,),
            in_specs=[
                pl.BlockSpec((TB, Hp), lambda i: (i, 0)),   # streamed x
                pl.BlockSpec((Np, Hp), lambda i: (0, 0)),   # resident weight
                pl.BlockSpec((1, Np), lambda i: (0, 0)),    # resident bias
            ],
            out_specs=pl.BlockSpec((TB, Np), lambda i: (i, 0)),
        ),
        compiler_params=pltpu.CompilerParams(
            dimension_semantics=("parallel",)),             # independent tiles
    )(x_packed, w_packed, b_packed)

    # Unpack: [Bp, pack*2] -> [Bp*pack, 2], drop pack-padding rows.
    return out_packed.reshape(Bp * pack, out_f)[:B]


if __name__ == "__main__":
    # Small shapes consistent with the module: HSIZE=32, batch=8.
    B, HSIZE = 8, 32

    key = jax.random.PRNGKey(0)
    k_x, k_w, k_b = jax.random.split(key, 3)

    x_pooled = jax.random.normal(k_x, (B, HSIZE), dtype=jnp.float32)
    # nn.Linear(HSIZE, 2): weight [2, HSIZE], bias [2].
    weight = jax.random.normal(k_w, (2, HSIZE), dtype=jnp.float32) * 0.02
    bias = jax.random.normal(k_b, (2,), dtype=jnp.float32) * 0.02

    pred = jax.block_until_ready(mm_itm_head(x_pooled, weight, bias))
    ref = x_pooled @ weight.T + bias
    assert pred.shape == (B, 2)
    assert jnp.allclose(pred, ref, atol=1e-5, rtol=1e-5)

    # Multi-step grid with a ragged final block (Bp not a multiple of TB),
    # forced-even step count, no zero-pad copy of x (4200 % pack == 0).
    B2 = 4200
    x2 = jax.random.normal(jax.random.PRNGKey(1), (B2, HSIZE), dtype=jnp.float32)
    pred2 = jax.block_until_ready(mm_itm_head(x2, weight, bias, tile_b=256))
    ref2 = x2 @ weight.T + bias
    assert pred2.shape == (B2, 2)
    assert jnp.allclose(pred2, ref2, atol=1e-5, rtol=1e-5)

    # Hidden size that does not divide 128 (H=48 -> pad to 64, pack=2) plus an
    # odd batch (pack-padding path + ragged block).
    B3, H3 = 37, 48
    x3 = jax.random.normal(jax.random.PRNGKey(2), (B3, H3), dtype=jnp.float32)
    w3 = jax.random.normal(jax.random.PRNGKey(3), (2, H3), dtype=jnp.float32) * 0.02
    b3 = jax.random.normal(jax.random.PRNGKey(4), (2,), dtype=jnp.float32) * 0.02
    pred3 = jax.block_until_ready(mm_itm_head(x3, w3, b3))
    ref3 = x3 @ w3.T + b3
    assert pred3.shape == (B3, 2)
    assert jnp.allclose(pred3, ref3, atol=1e-5, rtol=1e-5)

    print("KERNEL_OK")
</pallas_src>

<mosaic_0001>
module attributes {stable_mosaic.version = 11 : i64} {
  func.func @_itm_head_kernel(%arg0: i32, %arg1: memref<8x128xf32, #tpu.memory_space<vmem>>, %arg2: memref<8x128xf32, #tpu.memory_space<vmem>>, %arg3: memref<1x8xf32, #tpu.memory_space<vmem>>, %arg4: memref<8x8xf32, #tpu.memory_space<vmem>>) attributes {dimension_semantics = [#tpu.dimension_semantics<parallel>], iteration_bounds = array<i64: 1>, scalar_prefetch = 0 : i64, scratch_operands = 0 : i64, tpu.core_type = #tpu.core_type<tc>, window_params = [{transform_indices = @transform_0, window_bounds = array<i64: 8, 128>}, {pipeline_mode = #tpu.pipeline_mode<synchronous>, transform_indices = @transform_1, window_bounds = array<i64: 8, 128>}, {pipeline_mode = #tpu.pipeline_mode<synchronous>, transform_indices = @transform_2, window_bounds = array<i64: 1, 8>}, {transform_indices = @transform_3, window_bounds = array<i64: 8, 8>}]} {
    %c0 = arith.constant 0 : index
    %c0_0 = arith.constant 0 : index
    %0 = vector.load %arg1[%c0, %c0_0] : memref<8x128xf32, #tpu.memory_space<vmem>>, vector<8x128xf32>
    %c0_1 = arith.constant 0 : index
    %c0_2 = arith.constant 0 : index
    %1 = vector.load %arg2[%c0_1, %c0_2] : memref<8x128xf32, #tpu.memory_space<vmem>>, vector<8x128xf32>
    %cst = arith.constant dense<0.000000e+00> : vector<8x8xf32>
    %2 = tpu.matmul %0, %1, %cst {dimension_numbers = #tpu.dot_dimension_numbers<[1], [1], [0], [0], [0, 0, 1, 0], [], []>} : vector<8x128xf32>, vector<8x128xf32>, vector<8x8xf32> -> vector<8x8xf32>
    %c0_3 = arith.constant 0 : index
    %c0_4 = arith.constant 0 : index
    %3 = vector.load %arg3[%c0_3, %c0_4] : memref<1x8xf32, #tpu.memory_space<vmem>>, vector<1x8xf32>
    %4 = vector.broadcast %3 : vector<1x8xf32> to vector<8x8xf32>
    %5 = arith.addf %2, %4 : vector<8x8xf32>
    %c0_5 = arith.constant 0 : index
    %c0_6 = arith.constant 0 : index
    %6 = vector.load %arg4[%c0_5, %c0_6] : memref<8x8xf32, #tpu.memory_space<vmem>>, vector<8x8xf32>
    tpu.vector_store %arg4[%c0_5, %c0_6], %5 {strides = array<i32>} : memref<8x8xf32, #tpu.memory_space<vmem>>, vector<8x8xf32>,
    return
  }
  func.func @transform_0(%arg0: i32) -> (i32, i32) {
    %c0_i32 = arith.constant 0 : i32
    %c0_i32_0 = arith.constant 0 : i32
    return %arg0, %c0_i32 : i32, i32
  }
  func.func @transform_1(%arg0: i32) -> (i32, i32) {
    %c0_i32 = arith.constant 0 : i32
    %c0_i32_0 = arith.constant 0 : i32
    %c0_i32_1 = arith.constant 0 : i32
    return %c0_i32, %c0_i32_0 : i32, i32
  }
  func.func @transform_2(%arg0: i32) -> (i32, i32) {
    %c0_i32 = arith.constant 0 : i32
    %c0_i32_0 = arith.constant 0 : i32
    %c0_i32_1 = arith.constant 0 : i32
    return %c0_i32, %c0_i32_0 : i32, i32
  }
  func.func @transform_3(%arg0: i32) -> (i32, i32) {
    %c0_i32 = arith.constant 0 : i32
    %c0_i32_0 = arith.constant 0 : i32
    return %arg0, %c0_i32 : i32, i32
  }
}

</mosaic_0001>

<llo_original>
// kernel: tpu_custom_call.1
$region0: #{tpu_custom_call.1}
  #allocation0 [shape = 'u32[]', space=smem, size = 0x4, offset = 0x4, fixed_abs, tag = 'smem constant byte address 0x4 - core index']
  #allocation1 [shape = 'u32[144,128]{1,0:T(1,128)}', space=vmem, size = 0x12000, scoped, tag = 'internal scratch']
  %s0 = inlined_call_operand.hbm [shape: f32[2,128], index: 0, kind: input, shape index: {}]
  %s1 = inlined_call_operand.hbm [shape: f32[8,128], index: 1, kind: input, shape index: {}]
  %s2 = inlined_call_operand.vmem [shape: f32[1,8], index: 2, kind: input, shape index: {}]
  %s3 = inlined_call_operand.hbm [shape: f32[2,8], index: 3, kind: output, shape index: {}]
  %s4 = sld [smem:[#allocation0]]
  $region30: #{tpu_custom_call.1} parent=0
    _
  %s6 = ssub.s32 1, %s4
  %s7 = scalar_select 0, %s6, %s4
  $region1: #{tpu_custom_call.1} parent=0
    #allocation2 [shape = 'u8[4096]{0}', space=vmem, size = 0x1000, scoped, tag = 'input window, operand 0, single buffered']
    #allocation3 [shape = 's32[1]{0}', space=sflag, size = 0x4, scoped, tag = 'scoped memory for tpu_custom_call.1']
    #allocation4 [shape = 's32[1]{0}', space=sflag, size = 0x4, scoped, tag = 'scoped memory for tpu_custom_call.1']
    #allocation5 [shape = 'u8[4096]{0}', space=vmem, size = 0x1000, scoped, tag = 'input window, operand 1, single buffered']
    #allocation6 [shape = 's32[1]{0}', space=sflag, size = 0x4, scoped, tag = 'scoped memory for tpu_custom_call.1']
    #allocation7 [shape = 'u8[4096]{0}', space=vmem, size = 0x1000, scoped, tag = 'output window, operand 0, single buffered']
    %8 = vsyncpa [#allocation3], 0
    %9 = vsyncpa [#allocation6], 0
    %10 = vsyncpa [#allocation4], 0
    // Predicated region
    $region2: #{tpu_custom_call.1} parent=1 // pred_check
      _
    $region3: #{tpu_custom_call.1} parent=1 // pred_check_branch
      %12 = sbr.rel (0) target = $region5
    $region4: #{tpu_custom_call.1} parent=1 // pred_region
      %s14 = ssub.s32 128, 32
      %15 = vsyncadd [#allocation3], %s14
      %s16 = sshll.u32 [#allocation2], 4
      %s17 = int_to_ptr.vmem [resolvable:$true] %s16
      %22 = dma.hbm_to_vmem [thread:$0]  %s0, 32, %s17, [#allocation3], 32, 32, 2
    $region5: #{tpu_custom_call.1} parent=1 // pred_fallthru
      _
    // Predicated region
    $region6: #{tpu_custom_call.1} parent=1 // pred_check
      _
    $region7: #{tpu_custom_call.1} parent=1 // pred_check_branch
      %24 = sbr.rel (0) target = $region9
    $region8: #{tpu_custom_call.1} parent=1 // pred_region
      %s26 = ssub.s32 128, 128
      %27 = vsyncadd [#allocation6], %s26
      %s29 = sshll.u32 [#allocation5], 4
      %s30 = int_to_ptr.vmem [resolvable:$true] %s29
      %32 = dma.hbm_to_vmem [thread:$0]  %s1, 128, %s30, [#allocation6]
    $region9: #{tpu_custom_call.1} parent=1 // pred_fallthru
      _
    // Predicated region
    $region10: #{tpu_custom_call.1} parent=1 // pred_check
      _
    $region11: #{tpu_custom_call.1} parent=1 // pred_check_branch
      %34 = sbr.rel (0) target = $region13
    $region12: #{tpu_custom_call.1} parent=1 // pred_region
      _
    $region13: #{tpu_custom_call.1} parent=1 // pred_fallthru
      _
    // Predicated region
    $region14: #{tpu_custom_call.1} parent=1 // pred_check
      _
    $region15: #{tpu_custom_call.1} parent=1 // pred_check_branch
      %36 = sbr.rel (0) target = $region17
    $region16: #{tpu_custom_call.1} parent=1 // pred_region
      %37 = dma.done [#allocation3], 128
    $region17: #{tpu_custom_call.1} parent=1 // pred_fallthru
      _
    // Predicated region
    $region18: #{tpu_custom_call.1} parent=1 // pred_check
      _
    $region19: #{tpu_custom_call.1} parent=1 // pred_check_branch
      %39 = sbr.rel (0) target = $region21
    $region20: #{tpu_custom_call.1} parent=1 // pred_region
      %40 = dma.done [#allocation6], 128
    $region21: #{tpu_custom_call.1} parent=1 // pred_fallthru
      _
    %v41 = vld [vmem:[#allocation2] sm:$0xff]
    %v42 = vld [vmem:[#allocation5] sm:$0xff]
    %v43 = vld [vmem:[%s2] sm:$0x1]
    %v45 = vlaneseq
    %v46 = vshrl.u32 %v45, 7
    %v47 = vsub.s32 0, %v46
    %v48 = vrot.slane %v43, %v47
    %50 = vmatprep.subr.mxu0 0.0
    %51 = vmatpush1.xpose.msra.mxu0 0.0
    %52 = vmatprep.subr.mxu0 0.0
    %53 = vmatpush1.xpose.msra.mxu0 0.0
    %54 = vmatprep.subr.mxu0 0.0
    %55 = vmatpush1.xpose.msra.mxu0 0.0
    %56 = vmatprep.subr.mxu0 0.0
    %57 = vmatpush1.xpose.msra.mxu0 0.0
    %58 = vmatprep.subr.mxu0 0.0
    %59 = vmatpush1.xpose.msra.mxu0 0.0
    %60 = vmatprep.subr.mxu0 0.0
    %61 = vmatpush1.xpose.msra.mxu0 0.0
    %62 = vmatprep.subr.mxu0 0.0
    %63 = vmatpush1.xpose.msra.mxu0 0.0
    %64 = vmatprep.subr.mxu0 0.0
    %65 = vmatpush1.xpose.msra.mxu0 0.0
    %66 = vmatprep.subr.mxu0 0.0
    %67 = vmatpush1.xpose.msra.mxu0 0.0
    %68 = vmatprep.subr.mxu0 0.0
    %69 = vmatpush1.xpose.msra.mxu0 0.0
    %70 = vmatprep.subr.mxu0 0.0
    %71 = vmatpush1.xpose.msra.mxu0 0.0
    %72 = vmatprep.subr.mxu0 0.0
    %73 = vmatpush1.xpose.msra.mxu0 0.0
    %74 = vmatprep.subr.mxu0 0.0
    %75 = vmatpush1.xpose.msra.mxu0 0.0
    %76 = vmatprep.subr.mxu0 0.0
    %77 = vmatpush1.xpose.msra.mxu0 0.0
    %78 = vmatprep.subr.mxu0 0.0
    %79 = vmatpush1.xpose.msra.mxu0 0.0
    %80 = vmatprep.subr.mxu0 0.0
    %81 = vmatpush1.xpose.msra.mxu0 %v42
    %82 = vmatprep.subr.mxu0 0.0
    %83 = vmatpush2.xpose.msra.mxu0 0.0
    %84 = vmatprep.subr.mxu0 0.0
    %85 = vmatpush2.xpose.msra.mxu0 0.0
    %86 = vmatprep.subr.mxu0 0.0
    %87 = vmatpush2.xpose.msra.mxu0 0.0
    %88 = vmatprep.subr.mxu0 0.0
    %89 = vmatpush2.xpose.msra.mxu0 0.0
    %90 = vmatprep.subr.mxu0 0.0
    %91 = vmatpush2.xpose.msra.mxu0 0.0
    %92 = vmatprep.subr.mxu0 0.0
    %93 = vmatpush2.xpose.msra.mxu0 0.0
    %94 = vmatprep.subr.mxu0 0.0
    %95 = vmatpush2.xpose.msra.mxu0 0.0
    %96 = vmatprep.subr.mxu0 0.0
    %97 = vmatpush2.xpose.msra.mxu0 0.0
    %98 = vmatprep.subr.mxu0 0.0
    %99 = vmatpush2.xpose.msra.mxu0 0.0
    %100 = vmatprep.subr.mxu0 0.0
    %101 = vmatpush2.xpose.msra.mxu0 0.0
    %102 = vmatprep.subr.mxu0 0.0
    %103 = vmatpush2.xpose.msra.mxu0 0.0
    %104 = vmatprep.subr.mxu0 0.0
    %105 = vmatpush2.xpose.msra.mxu0 0.0
    %106 = vmatprep.subr.mxu0 0.0
    %107 = vmatpush2.xpose.msra.mxu0 0.0
    %108 = vmatprep.subr.mxu0 0.0
    %109 = vmatpush2.xpose.msra.mxu0 0.0
    %110 = vmatprep.subr.mxu0 0.0
    %111 = vmatpush2.xpose.msra.mxu0 0.0
    %112 = vmatprep.subr.mxu0 0.0
    %113 = vmatpush2.xpose.msra.mxu0 0.0
    %114 = vmatprep.mubr.f32.mxu0 0.0
    %115 = vmatmul.mubr.f32.gmra.mxu0 %v41
    %v116 = vpop.f32.mrf.mxu0
    %v117 = vadd.f32 %v48, %v116
    %v118 = vpop.f32.mrf.mxu0
    %119 = vdwg.mxu0
    %vm120 = vcmask 64512
    %121 = vst.msk [vmem:[#allocation7] sm:$0xff] %vm120, %v117
    // Predicated region
    $region22: #{tpu_custom_call.1} parent=1 // pred_check
      _
    $region23: #{tpu_custom_call.1} parent=1 // pred_check_branch
      %123 = sbr.rel (0) target = $region25
    $region24: #{tpu_custom_call.1} parent=1 // pred_region
      %s125 = ssub.s32 128, 32
      %126 = vsyncadd [#allocation4], %s125
      %s127 = sshll.u32 [#allocation7], 4
      %s128 = int_to_ptr.vmem [resolvable:$true] %s127
      %133 = dma.vmem_to_hbm [thread:$0]  %s128, 32, %s3, [#allocation4], 32, 32, 2
    $region25: #{tpu_custom_call.1} parent=1 // pred_fallthru
      _
    // Predicated region
    $region26: #{tpu_custom_call.1} parent=1 // pred_check
      _
    $region27: #{tpu_custom_call.1} parent=1 // pred_check_branch
      %135 = sbr.rel (0) target = $region29
    $region28: #{tpu_custom_call.1} parent=1 // pred_region
      %136 = dma.done [#allocation4], 128
    $region29: #{tpu_custom_call.1} parent=1 // pred_fallthru
      _
    %137 = vsyncpa [#allocation3], 1
    %138 = vsyncpa [#allocation6], 1
    %139 = vsyncpa [#allocation4], 1

</llo_original>
